<compile_context>
chip_gen: v5e
topology: v5e:2x2
jax: 0.10.0
libtpu: 0.0.40
codegen_flags: <defaults>
</compile_context>

<pallas_src>
import functools

import jax
import jax.numpy as jnp
from jax.experimental import pallas as pl
from jax.experimental.pallas import tpu as pltpu

EPS = 1e-5  # BatchNorm eps (PyTorch default)


def _round_up(x, m):
    return ((x + m - 1) // m) * m


def _tpu_defaults():
    """(max_row_tile, vmem_limit_bytes) per TPU generation."""
    try:
        kind = jax.devices()[0].device_kind.lower()
    except Exception:  # pragma: no cover - defensive
        kind = ""
    if "v6" in kind:
        # 128 MiB VMEM, single TC: bigger tiles amortize the ~0.35us per-step overhead.
        return 1024, 64 * 1024 * 1024
    # v5e: 16 MiB scoped default -> keep 512. v7x: 64 MiB VMEM and 2 TCs want >=2 tiles.
    return 512, None


MAX_TILE_ROWS, VMEM_LIMIT_BYTES = _tpu_defaults()


def _row_tile(n, max_tile=MAX_TILE_ROWS):
    """Row tile: full extent for tiny n, otherwise 16-aligned and aiming for >=2 balanced
    tiles so both v7x TensorCores get work (dimension_semantics=("parallel",))."""
    if n <= 16:
        return max(n, 1)                      # single full-extent tile (block == array dim)
    return min(max_tile, _round_up((n + 1) // 2, 16))


# ------------------------------ Pallas kernels ------------------------------

def _proj_kernel(x_ref, scale_ref, shift_ref, w_ref, a_ref, feat_ref, logit_ref):
    # Fused prologue (BatchNorm affine or HeteroConv 0.5-mean, + ReLU) in f32, then one
    # wide lane-dense feature matmul [GAT lin_src | SAGE W_l | SAGE W_r] plus a tiny
    # attention-logit matmul (att_src/att_dst folded into the weight), both bf16 on the
    # MXU with f32 accumulation. Feature slab stored bf16; logits stored f32.
    h = jnp.maximum(x_ref[...] * scale_ref[...] + shift_ref[...], 0.0).astype(jnp.bfloat16)
    feat_ref[...] = jnp.dot(h, w_ref[...],
                            preferred_element_type=jnp.float32).astype(feat_ref.dtype)
    logit_ref[...] = jnp.dot(h, a_ref[...], preferred_element_type=jnp.float32)


def _linear_bias_stats_kernel(x_ref, w_ref, b_ref, z_ref, stats_ref, *, n_rows, tile_rows):
    # Z = X @ W + b (bf16 operands, f32 accumulation) plus per-tile column sum /
    # sum-of-squares so full-batch BatchNorm statistics stay exact under row tiling.
    # z stays f32 (feeds exact BN stats); only the last (possibly partial) tile masks rows.
    z = jnp.dot(x_ref[...], w_ref[...], preferred_element_type=jnp.float32) + b_ref[...]
    z_ref[...] = z

    def _write_stats(zz):
        # Direct slice stores (no concatenate/reshape relayout).
        stats_ref[:, 0:1, :] = jnp.sum(zz, axis=0, keepdims=True)[None]
        stats_ref[:, 1:2, :] = jnp.sum(zz * zz, axis=0, keepdims=True)[None]

    last = pl.num_programs(0) - 1

    @pl.when(pl.program_id(0) != last)
    def _():
        _write_stats(z)                       # interior tiles: all rows valid, no masking

    @pl.when(pl.program_id(0) == last)
    def _():
        # Mask rows past the true array end so the partial edge tile doesn't pollute stats.
        row = last * tile_rows + jax.lax.broadcasted_iota(jnp.int32, z.shape, 0)
        _write_stats(jnp.where(row < n_rows, z, 0.0))


# ------------------------------ Pallas wrappers ------------------------------

def pallas_fused_proj(x, scale, shift, w_feat, w_att):
    """Row-tiled  relu(x*scale + shift) @ [W_feat | W_att]  with resident weights.

    Returns (feat (n, 3*hidden) bf16, logits (n, 2*heads) f32). x stays f32 because its
    producers (embedding z / jnp scatter sums) are f32; the prologue removes the standalone
    BN-ReLU / HeteroConv-mean elementwise passes entirely.
    """
    n, k = x.shape
    d_feat = w_feat.shape[1]
    d_att = w_att.shape[1]
    w_feat = w_feat.astype(jnp.bfloat16)
    w_att = w_att.astype(jnp.bfloat16)
    tile = _row_tile(n)
    grid = (pl.cdiv(n, tile),)
    feat, logits = pl.pallas_call(
        _proj_kernel,
        grid=grid,
        in_specs=[
            pl.BlockSpec((tile, k), lambda i: (i, 0)),
            pl.BlockSpec((1, k), lambda i: (0, 0)),          # prologue scale (resident)
            pl.BlockSpec((1, k), lambda i: (0, 0)),          # prologue shift (resident)
            pl.BlockSpec((k, d_feat), lambda i: (0, 0)),     # fused feature weight (resident)
            pl.BlockSpec((k, d_att), lambda i: (0, 0)),      # folded attention weight (resident)
        ],
        out_specs=[
            pl.BlockSpec((tile, d_feat), lambda i: (i, 0)),
            pl.BlockSpec((tile, d_att), lambda i: (i, 0)),
        ],
        out_shape=[
            jax.ShapeDtypeStruct((n, d_feat), jnp.bfloat16),
            jax.ShapeDtypeStruct((n, d_att), jnp.float32),
        ],
        compiler_params=pltpu.CompilerParams(
            dimension_semantics=("parallel",), vmem_limit_bytes=VMEM_LIMIT_BYTES),
    )(x, scale, shift, w_feat, w_att)
    return feat, logits


def pallas_linear_bias_stats(x, w, b):
    """Row-tiled Z = X @ W + b plus per-tile (col-sum, col-sumsq) for exact batch BN."""
    n, k = x.shape
    dout = w.shape[1]
    x = x.astype(jnp.bfloat16)                # cast tiny raw features at the producer
    w = w.astype(jnp.bfloat16)
    tile = _row_tile(n)
    nt = pl.cdiv(n, tile)
    kernel = functools.partial(_linear_bias_stats_kernel, n_rows=n, tile_rows=tile)
    z, stats = pl.pallas_call(
        kernel,
        grid=(nt,),
        in_specs=[
            pl.BlockSpec((tile, k), lambda i: (i, 0)),
            pl.BlockSpec((k, dout), lambda i: (0, 0)),       # weight resident
            pl.BlockSpec((1, dout), lambda i: (0, 0)),       # bias resident
        ],
        out_specs=[
            pl.BlockSpec((tile, dout), lambda i: (i, 0)),
            pl.BlockSpec((1, 2, dout), lambda i: (i, 0, 0)),
        ],
        out_shape=[
            jax.ShapeDtypeStruct((n, dout), jnp.float32),
            jax.ShapeDtypeStruct((nt, 2, dout), jnp.float32),
        ],
        compiler_params=pltpu.CompilerParams(
            dimension_semantics=("parallel",), vmem_limit_bytes=VMEM_LIMIT_BYTES),
    )(x, w, b.reshape(1, dout))
    return z, stats


def bn_scale_shift_from_stats(stats, gamma, beta, n_rows):
    """Exact full-batch BN (training stats, biased var) reduced from per-tile partials;
    returns the per-column (scale, shift) that the consumer kernel's prologue applies.
    Note: single-pass E[z^2]-mean^2 in f32 (can cancel if |mean| >> std; fine at GNN scales)."""
    total = jnp.sum(stats, axis=0)            # (2, dout)
    mean = total[0] / n_rows
    var = jnp.maximum(total[1] / n_rows - mean * mean, 0.0)
    scale = gamma * jax.lax.rsqrt(var + EPS)
    shift = beta - mean * scale
    return scale.reshape(1, -1), shift.reshape(1, -1)


# ------------------------- graph message passing (glue) ----------------------
# TODO(synk): gather / segment-softmax / scatter-add below are data-dependent indexing; for
# production edge counts move them to a PrefetchScalarGridSpec Pallas kernel (dst-sorted edges).

def gat_aggregate(msg_src, a_src, a_dst, edge_index, bias, heads, out_ch, num_dst):
    """Bipartite GATConv(heads, concat=True, add_self_loops=False, neg_slope=0.2) consuming
    pre-projected bf16 source messages and per-node attention logits from the proj kernel."""
    src, dst = edge_index[0], edge_index[1]
    alpha = a_src[src] + a_dst[dst]                             # (E, H) f32
    alpha = jax.nn.leaky_relu(alpha, negative_slope=0.2)
    amax = jax.ops.segment_max(alpha, dst, num_segments=num_dst)
    amax = jnp.where(jnp.isfinite(amax), amax, 0.0)             # empty-segment -inf guard
    ex = jnp.exp(alpha - amax[dst])
    denom = jax.ops.segment_sum(ex, dst, num_segments=num_dst) + 1e-16
    w = ex / denom[dst]                                         # softmax per dst node
    xs = msg_src.reshape(-1, heads, out_ch)                     # bf16 messages
    msg = xs[src].astype(jnp.float32) * w[:, :, None]           # f32 accumulate
    out = jax.ops.segment_sum(msg, dst, num_segments=num_dst)   # (num_dst, H, C)
    return out.reshape(num_dst, heads * out_ch) + bias


def sage_aggregate(x_l, x_r, edge_index, b_l, num_dst):
    """SAGEConv(mean): mean_neighbors(x @ W_l) + b_l + x_dst @ W_r (projections already
    applied, bf16; valid since mean aggregation is linear)."""
    src, dst = edge_index[0], edge_index[1]
    summed = jax.ops.segment_sum(x_l[src].astype(jnp.float32), dst, num_segments=num_dst)
    cnt = jax.ops.segment_sum(jnp.ones((src.shape[0],), jnp.float32), dst,
                              num_segments=num_dst)
    mean = summed / jnp.maximum(cnt, 1.0)[:, None]
    return mean + b_l + x_r.astype(jnp.float32)


# --------------------------------- forward ----------------------------------

def _forward(params, user_x, post_x, edge_index_dict, *, num_categories, hidden_dim):
    n_users, n_posts = user_x.shape[0], post_x.shape[0]
    heads, out_ch = 2, hidden_dim // 2

    # user_embedding: Linear (+ exact tiled BN stats). BN normalize + ReLU + Dropout(0)
    # are folded into the first conv layer's projection prologue.
    z_u, st_u = pallas_linear_bias_stats(user_x, params["user_w"], params["user_b"])
    sc_user, sh_user = bn_scale_shift_from_stats(
        st_u, params["user_gamma"], params["user_beta"], n_users)

    # post_embedding: ContentEmbedding -> Linear (+ stats); BN/ReLU folded downstream.
    cat_ids = jnp.clip(post_x[:, 0].astype(jnp.int32), 0, num_categories)
    cat_emb = jnp.take(params["cat_table"], cat_ids, axis=0)  # TODO(synk): Pallas gather
    other = post_x[:, 1:]
    if other.shape[0] > 1:  # ContentEmbedding's BatchNorm1d(3) gate (3 cols, trivial jnp)
        mu = jnp.mean(other, axis=0, keepdims=True)
        var = jnp.mean((other - mu) ** 2, axis=0, keepdims=True)
        other = (other - mu) * jax.lax.rsqrt(var + EPS) * params["bn3_gamma"] + params["bn3_beta"]
    post_in = jnp.concatenate([cat_emb, other], axis=1)
    z_p, st_p = pallas_linear_bias_stats(post_in, params["post_w"], params["post_b"])
    sc_post, sh_post = bn_scale_shift_from_stats(
        st_p, params["post_gamma"], params["post_beta"], n_posts)

    e_u2p = edge_index_dict[("user", "interacts", "post")]
    e_p2u = edge_index_dict[("post", "rev_interacts", "user")]
    e_uu = edge_index_dict[("user", "similar_to", "user")]
    e_pp = edge_index_dict[("post", "similar_to", "post")]

    # Carried state: raw pre-activation slab + the affine/ReLU that the *next* projection
    # kernel applies as its prologue (BN for layer 0, HeteroConv 0.5-mean afterwards).
    x_user, x_post = z_u, z_p
    half = jnp.full((1, hidden_dim), 0.5, jnp.float32)
    zero = jnp.zeros((1, hidden_dim), jnp.float32)
    h = hidden_dim

    for layer in params["convs"]:
        uf, ul = pallas_fused_proj(x_user, sc_user, sh_user,
                                   layer["w_user_feat"], layer["w_user_att"])
        pf, plog = pallas_fused_proj(x_post, sc_post, sh_post,
                                     layer["w_post_feat"], layer["w_post_att"])

        u_msg, u_sage_l, u_sage_r = uf[:, :h], uf[:, h:2 * h], uf[:, 2 * h:]
        p_msg, p_sage_l, p_sage_r = pf[:, :h], pf[:, h:2 * h], pf[:, 2 * h:]
        u_asrc, u_adst = ul[:, :heads], ul[:, heads:]
        p_asrc, p_adst = plog[:, :heads], plog[:, heads:]

        out_post_gat = gat_aggregate(u_msg, u_asrc, p_adst, e_u2p,
                                     layer["gat_u2p_bias"], heads, out_ch, n_posts)
        out_user_gat = gat_aggregate(p_msg, p_asrc, u_adst, e_p2u,
                                     layer["gat_p2u_bias"], heads, out_ch, n_users)
        out_user_sage = sage_aggregate(u_sage_l, u_sage_r, e_uu, layer["sage_u_b"], n_users)
        out_post_sage = sage_aggregate(p_sage_l, p_sage_r, e_pp, layer["sage_p_b"], n_posts)

        # HeteroConv(aggr='mean') over the two edge types + ReLU + Dropout(0): carried as
        # (sum, scale=0.5, shift=0) and applied in the next projection kernel's prologue.
        x_user = out_user_gat + out_user_sage
        x_post = out_post_gat + out_post_sage
        sc_user = sc_post = half
        sh_user = sh_post = zero

    # Final layer has no Pallas consumer: apply its mean + ReLU epilogue in plain jnp.
    user_h = jnp.maximum(x_user * 0.5, 0.0)
    post_h = jnp.maximum(x_post * 0.5, 0.0)
    return {"user": user_h, "post": post_h}


hetero_gnn_forward = jax.jit(_forward, static_argnames=("num_categories", "hidden_dim"))


# ---------------------------- deterministic init ----------------------------

def _att_fold(w, att):
    """Fold a GAT attention vector into its projection:
    ((x @ w).view(-1,H,C) * att).sum(-1) == x @ fold,  fold: (din, H)."""
    din = w.shape[0]
    heads, ch = att.shape[1], att.shape[2]
    return jnp.einsum("dhc,hc->dh", w.reshape(din, heads, ch), att[0])


def init_params(key, user_dim, post_dim, hidden, num_layers, num_categories, heads=2):
    keys = iter(jax.random.split(key, 256))
    half = hidden // 2

    def lin(din, dout):  # kaiming-normal-ish (fan_out, relu); biases zero (as in module)
        return jax.random.normal(next(keys), (din, dout), jnp.float32) * jnp.sqrt(2.0 / dout)

    params = {
        "user_w": lin(user_dim, hidden),
        "user_b": jnp.zeros((hidden,), jnp.float32),
        "user_gamma": jnp.ones((hidden,), jnp.float32),
        "user_beta": jnp.zeros((hidden,), jnp.float32),
        "cat_table": jax.random.normal(next(keys), (num_categories + 1, half), jnp.float32)
                     * jnp.sqrt(2.0 / (num_categories + 1 + half)),
        "bn3_gamma": jnp.ones((3,), jnp.float32),
        "bn3_beta": jnp.zeros((3,), jnp.float32),
        "post_w": lin(post_dim + half - 1, hidden),
        "post_b": jnp.zeros((hidden,), jnp.float32),
        "post_gamma": jnp.ones((hidden,), jnp.float32),
        "post_beta": jnp.zeros((hidden,), jnp.float32),
        "convs": [],
    }

    def gat():
        return dict(
            w_src=lin(hidden, hidden), w_dst=lin(hidden, hidden),   # heads*(hidden//2)==hidden
            att_src=jax.random.normal(next(keys), (1, heads, half), jnp.float32) * 0.1,
            att_dst=jax.random.normal(next(keys), (1, heads, half), jnp.float32) * 0.1,
            bias=jnp.zeros((hidden,), jnp.float32))

    def sage():
        return dict(w_l=lin(hidden, hidden), w_r=lin(hidden, hidden),
                    b_l=jnp.zeros((hidden,), jnp.float32))

    for _ in range(num_layers):
        g_u2p, g_p2u, s_u, s_p = gat(), gat(), sage(), sage()
        params["convs"].append({
            "gat_u2p_bias": g_u2p["bias"], "gat_p2u_bias": g_p2u["bias"],
            "sage_u_b": s_u["b_l"], "sage_p_b": s_p["b_l"],
            # Fused, pre-cast bf16 feature weights: [GAT lin_src | SAGE W_l | SAGE W_r].
            # GAT lin_dst is only needed for the per-node attention logit, so it is folded
            # (with att_dst; att_src likewise) into the tiny (hidden, 2*heads) logit weight
            # instead of being materialized per node (f32 folds, cast once to bf16).
            "w_user_feat": jnp.concatenate(
                [g_u2p["w_src"], s_u["w_l"], s_u["w_r"]], axis=1).astype(jnp.bfloat16),
            "w_post_feat": jnp.concatenate(
                [g_p2u["w_src"], s_p["w_l"], s_p["w_r"]], axis=1).astype(jnp.bfloat16),
            "w_user_att": jnp.concatenate(
                [_att_fold(g_u2p["w_src"], g_u2p["att_src"]),
                 _att_fold(g_p2u["w_dst"], g_p2u["att_dst"])], axis=1).astype(jnp.bfloat16),
            "w_post_att": jnp.concatenate(
                [_att_fold(g_p2u["w_src"], g_p2u["att_src"]),
                 _att_fold(g_u2p["w_dst"], g_u2p["att_dst"])], axis=1).astype(jnp.bfloat16),
        })
    return params


# ----------------------------------- main ------------------------------------

if __name__ == "__main__":
    hidden = 32
    user_dim = 6
    post_dim = 4          # col 0 = category id, cols 1:4 = 3 features (BatchNorm1d(3))
    n_users, n_posts = 8, 12
    num_layers = 2
    num_categories = 14

    key = jax.random.PRNGKey(0)
    (k_param, k_u, k_p, k_cat, k_e1, k_e2, k_e3, _) = jax.random.split(key, 8)

    params = init_params(k_param, user_dim, post_dim, hidden, num_layers, num_categories)

    user_x = jax.random.normal(k_u, (n_users, user_dim), jnp.float32)
    post_other = jax.random.normal(k_p, (n_posts, post_dim - 1), jnp.float32)
    cat_col = jax.random.randint(k_cat, (n_posts, 1), 0, num_categories + 1).astype(jnp.float32)
    post_x = jnp.concatenate([cat_col, post_other], axis=1)

    n_edges = 24
    e_u2p = jnp.stack([jax.random.randint(k_e1, (n_edges,), 0, n_users),
                       jax.random.randint(k_e2, (n_edges,), 0, n_posts)])
    e_p2u = jnp.stack([e_u2p[1], e_u2p[0]])
    ku1, ku2, kp1, kp2 = jax.random.split(k_e3, 4)
    e_uu = jnp.stack([jax.random.randint(ku1, (16,), 0, n_users),
                      jax.random.randint(ku2, (16,), 0, n_users)])
    e_pp = jnp.stack([jax.random.randint(kp1, (16,), 0, n_posts),
                      jax.random.randint(kp2, (16,), 0, n_posts)])

    edge_index_dict = {
        ("user", "interacts", "post"): e_u2p,
        ("post", "rev_interacts", "user"): e_p2u,
        ("user", "similar_to", "user"): e_uu,
        ("post", "similar_to", "post"): e_pp,
    }

    out = hetero_gnn_forward(params, user_x, post_x, edge_index_dict,
                             num_categories=num_categories, hidden_dim=hidden)
    out = jax.block_until_ready(out)

    assert out["user"].shape == (n_users, hidden)
    assert out["post"].shape == (n_posts, hidden)
    assert bool(jnp.all(jnp.isfinite(out["user"]))) and bool(jnp.all(jnp.isfinite(out["post"])))
    print("KERNEL_OK")
</pallas_src>

<mosaic_0001>
module attributes {stable_mosaic.version = 11 : i64} {
  func.func @_proj_kernel(%arg0: i32, %arg1: memref<12x32xf32, #tpu.memory_space<vmem>>, %arg2: memref<1x32xf32, #tpu.memory_space<vmem>>, %arg3: memref<1x32xf32, #tpu.memory_space<vmem>>, %arg4: memref<32x96xbf16, #tpu.memory_space<vmem>>, %arg5: memref<32x4xbf16, #tpu.memory_space<vmem>>, %arg6: memref<12x96xbf16, #tpu.memory_space<vmem>>, %arg7: memref<12x4xf32, #tpu.memory_space<vmem>>) attributes {dimension_semantics = [#tpu.dimension_semantics<parallel>], iteration_bounds = array<i64: 1>, scalar_prefetch = 0 : i64, scratch_operands = 0 : i64, tpu.core_type = #tpu.core_type<tc>, window_params = [{transform_indices = @transform_0, window_bounds = array<i64: 12, 32>}, {pipeline_mode = #tpu.pipeline_mode<synchronous>, transform_indices = @transform_1, window_bounds = array<i64: 1, 32>}, {pipeline_mode = #tpu.pipeline_mode<synchronous>, transform_indices = @transform_2, window_bounds = array<i64: 1, 32>}, {pipeline_mode = #tpu.pipeline_mode<synchronous>, transform_indices = @transform_3, window_bounds = array<i64: 32, 96>}, {pipeline_mode = #tpu.pipeline_mode<synchronous>, transform_indices = @transform_4, window_bounds = array<i64: 32, 4>}, {transform_indices = @transform_5, window_bounds = array<i64: 12, 96>}, {transform_indices = @transform_6, window_bounds = array<i64: 12, 4>}]} {
    %c0 = arith.constant 0 : index
    %c0_0 = arith.constant 0 : index
    %0 = vector.load %arg1[%c0, %c0_0] : memref<12x32xf32, #tpu.memory_space<vmem>>, vector<12x32xf32>
    %c0_1 = arith.constant 0 : index
    %c0_2 = arith.constant 0 : index
    %1 = vector.load %arg2[%c0_1, %c0_2] : memref<1x32xf32, #tpu.memory_space<vmem>>, vector<1x32xf32>
    %2 = vector.broadcast %1 : vector<1x32xf32> to vector<12x32xf32>
    %3 = arith.mulf %0, %2 : vector<12x32xf32>
    %c0_3 = arith.constant 0 : index
    %c0_4 = arith.constant 0 : index
    %4 = vector.load %arg3[%c0_3, %c0_4] : memref<1x32xf32, #tpu.memory_space<vmem>>, vector<1x32xf32>
    %5 = vector.broadcast %4 : vector<1x32xf32> to vector<12x32xf32>
    %6 = arith.addf %3, %5 : vector<12x32xf32>
    %cst = arith.constant 0.000000e+00 : f32
    %7 = vector.broadcast %cst : f32 to vector<12x32xf32>
    %8 = arith.maximumf %6, %7 : vector<12x32xf32>
    %9 = arith.truncf %8 : vector<12x32xf32> to vector<12x32xbf16>
    %c0_5 = arith.constant 0 : index
    %c0_6 = arith.constant 0 : index
    %10 = vector.load %arg4[%c0_5, %c0_6] : memref<32x96xbf16, #tpu.memory_space<vmem>>, vector<32x96xbf16>
    %cst_7 = arith.constant dense<0.000000e+00> : vector<12x96xf32>
    %11 = tpu.matmul %9, %10, %cst_7 {dimension_numbers = #tpu.dot_dimension_numbers<[1], [0], [0], [1], [0, 0, 1, 1], [], []>} : vector<12x32xbf16>, vector<32x96xbf16>, vector<12x96xf32> -> vector<12x96xf32>
    %12 = arith.truncf %11 : vector<12x96xf32> to vector<12x96xbf16>
    %c0_8 = arith.constant 0 : index
    %c0_9 = arith.constant 0 : index
    %13 = vector.load %arg6[%c0_8, %c0_9] : memref<12x96xbf16, #tpu.memory_space<vmem>>, vector<12x96xbf16>
    tpu.vector_store %arg6[%c0_8, %c0_9], %12 {strides = array<i32>} : memref<12x96xbf16, #tpu.memory_space<vmem>>, vector<12x96xbf16>,
    %c0_10 = arith.constant 0 : index
    %c0_11 = arith.constant 0 : index
    %14 = vector.load %arg5[%c0_10, %c0_11] : memref<32x4xbf16, #tpu.memory_space<vmem>>, vector<32x4xbf16>
    %cst_12 = arith.constant dense<0.000000e+00> : vector<12x4xf32>
    %15 = tpu.matmul %9, %14, %cst_12 {dimension_numbers = #tpu.dot_dimension_numbers<[1], [0], [0], [1], [0, 0, 1, 1], [], []>} : vector<12x32xbf16>, vector<32x4xbf16>, vector<12x4xf32> -> vector<12x4xf32>
    %c0_13 = arith.constant 0 : index
    %c0_14 = arith.constant 0 : index
    %16 = vector.load %arg7[%c0_13, %c0_14] : memref<12x4xf32, #tpu.memory_space<vmem>>, vector<12x4xf32>
    tpu.vector_store %arg7[%c0_13, %c0_14], %15 {strides = array<i32>} : memref<12x4xf32, #tpu.memory_space<vmem>>, vector<12x4xf32>,
    return
  }
  func.func @transform_0(%arg0: i32) -> (i32, i32) {
    %c0_i32 = arith.constant 0 : i32
    %c0_i32_0 = arith.constant 0 : i32
    return %arg0, %c0_i32 : i32, i32
  }
  func.func @transform_1(%arg0: i32) -> (i32, i32) {
    %c0_i32 = arith.constant 0 : i32
    %c0_i32_0 = arith.constant 0 : i32
    %c0_i32_1 = arith.constant 0 : i32
    return %c0_i32, %c0_i32_0 : i32, i32
  }
  func.func @transform_2(%arg0: i32) -> (i32, i32) {
    %c0_i32 = arith.constant 0 : i32
    %c0_i32_0 = arith.constant 0 : i32
    %c0_i32_1 = arith.constant 0 : i32
    return %c0_i32, %c0_i32_0 : i32, i32
  }
  func.func @transform_3(%arg0: i32) -> (i32, i32) {
    %c0_i32 = arith.constant 0 : i32
    %c0_i32_0 = arith.constant 0 : i32
    %c0_i32_1 = arith.constant 0 : i32
    return %c0_i32, %c0_i32_0 : i32, i32
  }
  func.func @transform_4(%arg0: i32) -> (i32, i32) {
    %c0_i32 = arith.constant 0 : i32
    %c0_i32_0 = arith.constant 0 : i32
    %c0_i32_1 = arith.constant 0 : i32
    return %c0_i32, %c0_i32_0 : i32, i32
  }
  func.func @transform_5(%arg0: i32) -> (i32, i32) {
    %c0_i32 = arith.constant 0 : i32
    %c0_i32_0 = arith.constant 0 : i32
    return %arg0, %c0_i32 : i32, i32
  }
  func.func @transform_6(%arg0: i32) -> (i32, i32) {
    %c0_i32 = arith.constant 0 : i32
    %c0_i32_0 = arith.constant 0 : i32
    return %arg0, %c0_i32 : i32, i32
  }
}

module attributes {stable_mosaic.version = 11 : i64} {
  func.func @_linear_bias_stats_kernel(%arg0: i32, %arg1: memref<12x19xbf16, #tpu.memory_space<vmem>>, %arg2: memref<19x32xbf16, #tpu.memory_space<vmem>>, %arg3: memref<1x32xf32, #tpu.memory_space<vmem>>, %arg4: memref<12x32xf32, #tpu.memory_space<vmem>>, %arg5: memref<1x2x32xf32, #tpu.memory_space<vmem>>) attributes {dimension_semantics = [#tpu.dimension_semantics<parallel>], iteration_bounds = array<i64: 1>, scalar_prefetch = 0 : i64, scratch_operands = 0 : i64, tpu.core_type = #tpu.core_type<tc>, window_params = [{transform_indices = @transform_0, window_bounds = array<i64: 12, 19>}, {pipeline_mode = #tpu.pipeline_mode<synchronous>, transform_indices = @transform_1, window_bounds = array<i64: 19, 32>}, {pipeline_mode = #tpu.pipeline_mode<synchronous>, transform_indices = @transform_2, window_bounds = array<i64: 1, 32>}, {transform_indices = @transform_3, window_bounds = array<i64: 12, 32>}, {transform_indices = @transform_4, window_bounds = array<i64: 1, 2, 32>}]} {
    %c0 = arith.constant 0 : index
    %c0_0 = arith.constant 0 : index
    %0 = vector.load %arg1[%c0, %c0_0] : memref<12x19xbf16, #tpu.memory_space<vmem>>, vector<12x19xbf16>
    %c0_1 = arith.constant 0 : index
    %c0_2 = arith.constant 0 : index
    %1 = vector.load %arg2[%c0_1, %c0_2] : memref<19x32xbf16, #tpu.memory_space<vmem>>, vector<19x32xbf16>
    %cst = arith.constant dense<0.000000e+00> : vector<12x32xf32>
    %2 = tpu.matmul %0, %1, %cst {dimension_numbers = #tpu.dot_dimension_numbers<[1], [0], [0], [1], [0, 0, 1, 1], [], []>} : vector<12x19xbf16>, vector<19x32xbf16>, vector<12x32xf32> -> vector<12x32xf32>
    %c0_3 = arith.constant 0 : index
    %c0_4 = arith.constant 0 : index
    %3 = vector.load %arg3[%c0_3, %c0_4] : memref<1x32xf32, #tpu.memory_space<vmem>>, vector<1x32xf32>
    %4 = vector.broadcast %3 : vector<1x32xf32> to vector<12x32xf32>
    %5 = arith.addf %2, %4 : vector<12x32xf32>
    %c0_5 = arith.constant 0 : index
    %c0_6 = arith.constant 0 : index
    %6 = vector.load %arg4[%c0_5, %c0_6] : memref<12x32xf32, #tpu.memory_space<vmem>>, vector<12x32xf32>
    tpu.vector_store %arg4[%c0_5, %c0_6], %5 {strides = array<i32>} : memref<12x32xf32, #tpu.memory_space<vmem>>, vector<12x32xf32>,
    %c0_i32 = arith.constant 0 : i32
    %7 = arith.cmpi ne, %arg0, %c0_i32 : i32
    %8 = arith.extui %7 : i1 to i32
    %c0_i32_7 = arith.constant 0 : i32
    %9 = arith.cmpi ne, %8, %c0_i32_7 : i32
    scf.if %9 {
      %cst_10 = arith.constant dense<0.000000e+00> : vector<32xf32>
      %13 = vector.multi_reduction <add>, %5, %cst_10 [0] : vector<12x32xf32> to vector<32xf32>
      %14 = vector.shape_cast %13 : vector<32xf32> to vector<1x32xf32>
      %15 = vector.shape_cast %14 : vector<1x32xf32> to vector<1x1x32xf32>
      %c0_11 = arith.constant 0 : index
      %c0_12 = arith.constant 0 : index
      %c0_13 = arith.constant 0 : index
      %16 = vector.load %arg5[%c0_11, %c0_12, %c0_13] : memref<1x2x32xf32, #tpu.memory_space<vmem>>, vector<1x1x32xf32>
      tpu.vector_store %arg5[%c0_11, %c0_12, %c0_13], %15 {strides = array<i32>} : memref<1x2x32xf32, #tpu.memory_space<vmem>>, vector<1x1x32xf32>,
      %17 = arith.mulf %5, %5 : vector<12x32xf32>
      %cst_14 = arith.constant dense<0.000000e+00> : vector<32xf32>
      %18 = vector.multi_reduction <add>, %17, %cst_14 [0] : vector<12x32xf32> to vector<32xf32>
      %19 = vector.shape_cast %18 : vector<32xf32> to vector<1x32xf32>
      %20 = vector.shape_cast %19 : vector<1x32xf32> to vector<1x1x32xf32>
      %c0_15 = arith.constant 0 : index
      %c1 = arith.constant 1 : index
      %c0_16 = arith.constant 0 : index
      %21 = vector.load %arg5[%c0_15, %c1, %c0_16] : memref<1x2x32xf32, #tpu.memory_space<vmem>>, vector<1x1x32xf32>
      tpu.vector_store %arg5[%c0_15, %c1, %c0_16], %20 {strides = array<i32>} : memref<1x2x32xf32, #tpu.memory_space<vmem>>, vector<1x1x32xf32>,
    } else {
    }
    %c0_i32_8 = arith.constant 0 : i32
    %10 = arith.cmpi eq, %arg0, %c0_i32_8 : i32
    %11 = arith.extui %10 : i1 to i32
    %c0_i32_9 = arith.constant 0 : i32
    %12 = arith.cmpi ne, %11, %c0_i32_9 : i32
    scf.if %12 {
      %13 = tpu.iota {dimensions = array<i32: 0>} : vector<12x32xi32>
      %c0_i32_10 = arith.constant 0 : i32
      %14 = vector.broadcast %c0_i32_10 : i32 to vector<12x32xi32>
      %15 = arith.addi %14, %13 : vector<12x32xi32>
      %c12_i32 = arith.constant 12 : i32
      %16 = vector.broadcast %c12_i32 : i32 to vector<12x32xi32>
      %17 = arith.cmpi slt, %15, %16 : vector<12x32xi32>
      %cst_11 = arith.constant 0.000000e+00 : f32
      %18 = vector.broadcast %cst_11 : f32 to vector<12x32xf32>
      %19 = arith.select %17, %5, %18 : vector<12x32xi1>, vector<12x32xf32>
      %cst_12 = arith.constant dense<0.000000e+00> : vector<32xf32>
      %20 = vector.multi_reduction <add>, %19, %cst_12 [0] : vector<12x32xf32> to vector<32xf32>
      %21 = vector.shape_cast %20 : vector<32xf32> to vector<1x32xf32>
      %22 = vector.shape_cast %21 : vector<1x32xf32> to vector<1x1x32xf32>
      %c0_13 = arith.constant 0 : index
      %c0_14 = arith.constant 0 : index
      %c0_15 = arith.constant 0 : index
      %23 = vector.load %arg5[%c0_13, %c0_14, %c0_15] : memref<1x2x32xf32, #tpu.memory_space<vmem>>, vector<1x1x32xf32>
      tpu.vector_store %arg5[%c0_13, %c0_14, %c0_15], %22 {strides = array<i32>} : memref<1x2x32xf32, #tpu.memory_space<vmem>>, vector<1x1x32xf32>,
      %24 = arith.mulf %19, %19 : vector<12x32xf32>
      %cst_16 = arith.constant dense<0.000000e+00> : vector<32xf32>
      %25 = vector.multi_reduction <add>, %24, %cst_16 [0] : vector<12x32xf32> to vector<32xf32>
      %26 = vector.shape_cast %25 : vector<32xf32> to vector<1x32xf32>
      %27 = vector.shape_cast %26 : vector<1x32xf32> to vector<1x1x32xf32>
      %c0_17 = arith.constant 0 : index
      %c1 = arith.constant 1 : index
      %c0_18 = arith.constant 0 : index
      %28 = vector.load %arg5[%c0_17, %c1, %c0_18] : memref<1x2x32xf32, #tpu.memory_space<vmem>>, vector<1x1x32xf32>
      tpu.vector_store %arg5[%c0_17, %c1, %c0_18], %27 {strides = array<i32>} : memref<1x2x32xf32, #tpu.memory_space<vmem>>, vector<1x1x32xf32>,
    } else {
    }
    return
  }
  func.func @transform_0(%arg0: i32) -> (i32, i32) {
    %c0_i32 = arith.constant 0 : i32
    %c0_i32_0 = arith.constant 0 : i32
    return %arg0, %c0_i32 : i32, i32
  }
  func.func @transform_1(%arg0: i32) -> (i32, i32) {
    %c0_i32 = arith.constant 0 : i32
    %c0_i32_0 = arith.constant 0 : i32
    %c0_i32_1 = arith.constant 0 : i32
    return %c0_i32, %c0_i32_0 : i32, i32
  }
  func.func @transform_2(%arg0: i32) -> (i32, i32) {
    %c0_i32 = arith.constant 0 : i32
    %c0_i32_0 = arith.constant 0 : i32
    %c0_i32_1 = arith.constant 0 : i32
    return %c0_i32, %c0_i32_0 : i32, i32
  }
  func.func @transform_3(%arg0: i32) -> (i32, i32) {
    %c0_i32 = arith.constant 0 : i32
    %c0_i32_0 = arith.constant 0 : i32
    return %arg0, %c0_i32 : i32, i32
  }
  func.func @transform_4(%arg0: i32) -> (i32, i32, i32) {
    %c0_i32 = arith.constant 0 : i32
    %c0_i32_0 = arith.constant 0 : i32
    %c0_i32_1 = arith.constant 0 : i32
    return %arg0, %c0_i32, %c0_i32_0 : i32, i32, i32
  }
}

module attributes {stable_mosaic.version = 11 : i64} {
  func.func @_linear_bias_stats_kernel(%arg0: i32, %arg1: memref<8x6xbf16, #tpu.memory_space<vmem>>, %arg2: memref<6x32xbf16, #tpu.memory_space<vmem>>, %arg3: memref<1x32xf32, #tpu.memory_space<vmem>>, %arg4: memref<8x32xf32, #tpu.memory_space<vmem>>, %arg5: memref<1x2x32xf32, #tpu.memory_space<vmem>>) attributes {dimension_semantics = [#tpu.dimension_semantics<parallel>], iteration_bounds = array<i64: 1>, scalar_prefetch = 0 : i64, scratch_operands = 0 : i64, tpu.core_type = #tpu.core_type<tc>, window_params = [{transform_indices = @transform_0, window_bounds = array<i64: 8, 6>}, {pipeline_mode = #tpu.pipeline_mode<synchronous>, transform_indices = @transform_1, window_bounds = array<i64: 6, 32>}, {pipeline_mode = #tpu.pipeline_mode<synchronous>, transform_indices = @transform_2, window_bounds = array<i64: 1, 32>}, {transform_indices = @transform_3, window_bounds = array<i64: 8, 32>}, {transform_indices = @transform_4, window_bounds = array<i64: 1, 2, 32>}]} {
    %c0 = arith.constant 0 : index
    %c0_0 = arith.constant 0 : index
    %0 = vector.load %arg1[%c0, %c0_0] : memref<8x6xbf16, #tpu.memory_space<vmem>>, vector<8x6xbf16>
    %c0_1 = arith.constant 0 : index
    %c0_2 = arith.constant 0 : index
    %1 = vector.load %arg2[%c0_1, %c0_2] : memref<6x32xbf16, #tpu.memory_space<vmem>>, vector<6x32xbf16>
    %cst = arith.constant dense<0.000000e+00> : vector<8x32xf32>
    %2 = tpu.matmul %0, %1, %cst {dimension_numbers = #tpu.dot_dimension_numbers<[1], [0], [0], [1], [0, 0, 1, 1], [], []>} : vector<8x6xbf16>, vector<6x32xbf16>, vector<8x32xf32> -> vector<8x32xf32>
    %c0_3 = arith.constant 0 : index
    %c0_4 = arith.constant 0 : index
    %3 = vector.load %arg3[%c0_3, %c0_4] : memref<1x32xf32, #tpu.memory_space<vmem>>, vector<1x32xf32>
    %4 = vector.broadcast %3 : vector<1x32xf32> to vector<8x32xf32>
    %5 = arith.addf %2, %4 : vector<8x32xf32>
    %c0_5 = arith.constant 0 : index
    %c0_6 = arith.constant 0 : index
    %6 = vector.load %arg4[%c0_5, %c0_6] : memref<8x32xf32, #tpu.memory_space<vmem>>, vector<8x32xf32>
    tpu.vector_store %arg4[%c0_5, %c0_6], %5 {strides = array<i32>} : memref<8x32xf32, #tpu.memory_space<vmem>>, vector<8x32xf32>,
    %c0_i32 = arith.constant 0 : i32
    %7 = arith.cmpi ne, %arg0, %c0_i32 : i32
    %8 = arith.extui %7 : i1 to i32
    %c0_i32_7 = arith.constant 0 : i32
    %9 = arith.cmpi ne, %8, %c0_i32_7 : i32
    scf.if %9 {
      %cst_10 = arith.constant dense<0.000000e+00> : vector<32xf32>
      %13 = vector.multi_reduction <add>, %5, %cst_10 [0] : vector<8x32xf32> to vector<32xf32>
      %14 = vector.shape_cast %13 : vector<32xf32> to vector<1x32xf32>
      %15 = vector.shape_cast %14 : vector<1x32xf32> to vector<1x1x32xf32>
      %c0_11 = arith.constant 0 : index
      %c0_12 = arith.constant 0 : index
      %c0_13 = arith.constant 0 : index
      %16 = vector.load %arg5[%c0_11, %c0_12, %c0_13] : memref<1x2x32xf32, #tpu.memory_space<vmem>>, vector<1x1x32xf32>
      tpu.vector_store %arg5[%c0_11, %c0_12, %c0_13], %15 {strides = array<i32>} : memref<1x2x32xf32, #tpu.memory_space<vmem>>, vector<1x1x32xf32>,
      %17 = arith.mulf %5, %5 : vector<8x32xf32>
      %cst_14 = arith.constant dense<0.000000e+00> : vector<32xf32>
      %18 = vector.multi_reduction <add>, %17, %cst_14 [0] : vector<8x32xf32> to vector<32xf32>
      %19 = vector.shape_cast %18 : vector<32xf32> to vector<1x32xf32>
      %20 = vector.shape_cast %19 : vector<1x32xf32> to vector<1x1x32xf32>
      %c0_15 = arith.constant 0 : index
      %c1 = arith.constant 1 : index
      %c0_16 = arith.constant 0 : index
      %21 = vector.load %arg5[%c0_15, %c1, %c0_16] : memref<1x2x32xf32, #tpu.memory_space<vmem>>, vector<1x1x32xf32>
      tpu.vector_store %arg5[%c0_15, %c1, %c0_16], %20 {strides = array<i32>} : memref<1x2x32xf32, #tpu.memory_space<vmem>>, vector<1x1x32xf32>,
    } else {
    }
    %c0_i32_8 = arith.constant 0 : i32
    %10 = arith.cmpi eq, %arg0, %c0_i32_8 : i32
    %11 = arith.extui %10 : i1 to i32
    %c0_i32_9 = arith.constant 0 : i32
    %12 = arith.cmpi ne, %11, %c0_i32_9 : i32
    scf.if %12 {
      %13 = tpu.iota {dimensions = array<i32: 0>} : vector<8x32xi32>
      %c0_i32_10 = arith.constant 0 : i32
      %14 = vector.broadcast %c0_i32_10 : i32 to vector<8x32xi32>
      %15 = arith.addi %14, %13 : vector<8x32xi32>
      %c8_i32 = arith.constant 8 : i32
      %16 = vector.broadcast %c8_i32 : i32 to vector<8x32xi32>
      %17 = arith.cmpi slt, %15, %16 : vector<8x32xi32>
      %cst_11 = arith.constant 0.000000e+00 : f32
      %18 = vector.broadcast %cst_11 : f32 to vector<8x32xf32>
      %19 = arith.select %17, %5, %18 : vector<8x32xi1>, vector<8x32xf32>
      %cst_12 = arith.constant dense<0.000000e+00> : vector<32xf32>
      %20 = vector.multi_reduction <add>, %19, %cst_12 [0] : vector<8x32xf32> to vector<32xf32>
      %21 = vector.shape_cast %20 : vector<32xf32> to vector<1x32xf32>
      %22 = vector.shape_cast %21 : vector<1x32xf32> to vector<1x1x32xf32>
      %c0_13 = arith.constant 0 : index
      %c0_14 = arith.constant 0 : index
      %c0_15 = arith.constant 0 : index
      %23 = vector.load %arg5[%c0_13, %c0_14, %c0_15] : memref<1x2x32xf32, #tpu.memory_space<vmem>>, vector<1x1x32xf32>
      tpu.vector_store %arg5[%c0_13, %c0_14, %c0_15], %22 {strides = array<i32>} : memref<1x2x32xf32, #tpu.memory_space<vmem>>, vector<1x1x32xf32>,
      %24 = arith.mulf %19, %19 : vector<8x32xf32>
      %cst_16 = arith.constant dense<0.000000e+00> : vector<32xf32>
      %25 = vector.multi_reduction <add>, %24, %cst_16 [0] : vector<8x32xf32> to vector<32xf32>
      %26 = vector.shape_cast %25 : vector<32xf32> to vector<1x32xf32>
      %27 = vector.shape_cast %26 : vector<1x32xf32> to vector<1x1x32xf32>
      %c0_17 = arith.constant 0 : index
      %c1 = arith.constant 1 : index
      %c0_18 = arith.constant 0 : index
      %28 = vector.load %arg5[%c0_17, %c1, %c0_18] : memref<1x2x32xf32, #tpu.memory_space<vmem>>, vector<1x1x32xf32>
      tpu.vector_store %arg5[%c0_17, %c1, %c0_18], %27 {strides = array<i32>} : memref<1x2x32xf32, #tpu.memory_space<vmem>>, vector<1x1x32xf32>,
    } else {
    }
    return
  }
  func.func @transform_0(%arg0: i32) -> (i32, i32) {
    %c0_i32 = arith.constant 0 : i32
    %c0_i32_0 = arith.constant 0 : i32
    return %arg0, %c0_i32 : i32, i32
  }
  func.func @transform_1(%arg0: i32) -> (i32, i32) {
    %c0_i32 = arith.constant 0 : i32
    %c0_i32_0 = arith.constant 0 : i32
    %c0_i32_1 = arith.constant 0 : i32
    return %c0_i32, %c0_i32_0 : i32, i32
  }
  func.func @transform_2(%arg0: i32) -> (i32, i32) {
    %c0_i32 = arith.constant 0 : i32
    %c0_i32_0 = arith.constant 0 : i32
    %c0_i32_1 = arith.constant 0 : i32
    return %c0_i32, %c0_i32_0 : i32, i32
  }
  func.func @transform_3(%arg0: i32) -> (i32, i32) {
    %c0_i32 = arith.constant 0 : i32
    %c0_i32_0 = arith.constant 0 : i32
    return %arg0, %c0_i32 : i32, i32
  }
  func.func @transform_4(%arg0: i32) -> (i32, i32, i32) {
    %c0_i32 = arith.constant 0 : i32
    %c0_i32_0 = arith.constant 0 : i32
    %c0_i32_1 = arith.constant 0 : i32
    return %arg0, %c0_i32, %c0_i32_0 : i32, i32, i32
  }
}

module attributes {stable_mosaic.version = 11 : i64} {
  func.func @_proj_kernel(%arg0: i32, %arg1: memref<8x32xf32, #tpu.memory_space<vmem>>, %arg2: memref<1x32xf32, #tpu.memory_space<vmem>>, %arg3: memref<1x32xf32, #tpu.memory_space<vmem>>, %arg4: memref<32x96xbf16, #tpu.memory_space<vmem>>, %arg5: memref<32x4xbf16, #tpu.memory_space<vmem>>, %arg6: memref<8x96xbf16, #tpu.memory_space<vmem>>, %arg7: memref<8x4xf32, #tpu.memory_space<vmem>>) attributes {dimension_semantics = [#tpu.dimension_semantics<parallel>], iteration_bounds = array<i64: 1>, scalar_prefetch = 0 : i64, scratch_operands = 0 : i64, tpu.core_type = #tpu.core_type<tc>, window_params = [{transform_indices = @transform_0, window_bounds = array<i64: 8, 32>}, {pipeline_mode = #tpu.pipeline_mode<synchronous>, transform_indices = @transform_1, window_bounds = array<i64: 1, 32>}, {pipeline_mode = #tpu.pipeline_mode<synchronous>, transform_indices = @transform_2, window_bounds = array<i64: 1, 32>}, {pipeline_mode = #tpu.pipeline_mode<synchronous>, transform_indices = @transform_3, window_bounds = array<i64: 32, 96>}, {pipeline_mode = #tpu.pipeline_mode<synchronous>, transform_indices = @transform_4, window_bounds = array<i64: 32, 4>}, {transform_indices = @transform_5, window_bounds = array<i64: 8, 96>}, {transform_indices = @transform_6, window_bounds = array<i64: 8, 4>}]} {
    %c0 = arith.constant 0 : index
    %c0_0 = arith.constant 0 : index
    %0 = vector.load %arg1[%c0, %c0_0] : memref<8x32xf32, #tpu.memory_space<vmem>>, vector<8x32xf32>
    %c0_1 = arith.constant 0 : index
    %c0_2 = arith.constant 0 : index
    %1 = vector.load %arg2[%c0_1, %c0_2] : memref<1x32xf32, #tpu.memory_space<vmem>>, vector<1x32xf32>
    %2 = vector.broadcast %1 : vector<1x32xf32> to vector<8x32xf32>
    %3 = arith.mulf %0, %2 : vector<8x32xf32>
    %c0_3 = arith.constant 0 : index
    %c0_4 = arith.constant 0 : index
    %4 = vector.load %arg3[%c0_3, %c0_4] : memref<1x32xf32, #tpu.memory_space<vmem>>, vector<1x32xf32>
    %5 = vector.broadcast %4 : vector<1x32xf32> to vector<8x32xf32>
    %6 = arith.addf %3, %5 : vector<8x32xf32>
    %cst = arith.constant 0.000000e+00 : f32
    %7 = vector.broadcast %cst : f32 to vector<8x32xf32>
    %8 = arith.maximumf %6, %7 : vector<8x32xf32>
    %9 = arith.truncf %8 : vector<8x32xf32> to vector<8x32xbf16>
    %c0_5 = arith.constant 0 : index
    %c0_6 = arith.constant 0 : index
    %10 = vector.load %arg4[%c0_5, %c0_6] : memref<32x96xbf16, #tpu.memory_space<vmem>>, vector<32x96xbf16>
    %cst_7 = arith.constant dense<0.000000e+00> : vector<8x96xf32>
    %11 = tpu.matmul %9, %10, %cst_7 {dimension_numbers = #tpu.dot_dimension_numbers<[1], [0], [0], [1], [0, 0, 1, 1], [], []>} : vector<8x32xbf16>, vector<32x96xbf16>, vector<8x96xf32> -> vector<8x96xf32>
    %12 = arith.truncf %11 : vector<8x96xf32> to vector<8x96xbf16>
    %c0_8 = arith.constant 0 : index
    %c0_9 = arith.constant 0 : index
    %13 = vector.load %arg6[%c0_8, %c0_9] : memref<8x96xbf16, #tpu.memory_space<vmem>>, vector<8x96xbf16>
    tpu.vector_store %arg6[%c0_8, %c0_9], %12 {strides = array<i32>} : memref<8x96xbf16, #tpu.memory_space<vmem>>, vector<8x96xbf16>,
    %c0_10 = arith.constant 0 : index
    %c0_11 = arith.constant 0 : index
    %14 = vector.load %arg5[%c0_10, %c0_11] : memref<32x4xbf16, #tpu.memory_space<vmem>>, vector<32x4xbf16>
    %cst_12 = arith.constant dense<0.000000e+00> : vector<8x4xf32>
    %15 = tpu.matmul %9, %14, %cst_12 {dimension_numbers = #tpu.dot_dimension_numbers<[1], [0], [0], [1], [0, 0, 1, 1], [], []>} : vector<8x32xbf16>, vector<32x4xbf16>, vector<8x4xf32> -> vector<8x4xf32>
    %c0_13 = arith.constant 0 : index
    %c0_14 = arith.constant 0 : index
    %16 = vector.load %arg7[%c0_13, %c0_14] : memref<8x4xf32, #tpu.memory_space<vmem>>, vector<8x4xf32>
    tpu.vector_store %arg7[%c0_13, %c0_14], %15 {strides = array<i32>} : memref<8x4xf32, #tpu.memory_space<vmem>>, vector<8x4xf32>,
    return
  }
  func.func @transform_0(%arg0: i32) -> (i32, i32) {
    %c0_i32 = arith.constant 0 : i32
    %c0_i32_0 = arith.constant 0 : i32
    return %arg0, %c0_i32 : i32, i32
  }
  func.func @transform_1(%arg0: i32) -> (i32, i32) {
    %c0_i32 = arith.constant 0 : i32
    %c0_i32_0 = arith.constant 0 : i32
    %c0_i32_1 = arith.constant 0 : i32
    return %c0_i32, %c0_i32_0 : i32, i32
  }
  func.func @transform_2(%arg0: i32) -> (i32, i32) {
    %c0_i32 = arith.constant 0 : i32
    %c0_i32_0 = arith.constant 0 : i32
    %c0_i32_1 = arith.constant 0 : i32
    return %c0_i32, %c0_i32_0 : i32, i32
  }
  func.func @transform_3(%arg0: i32) -> (i32, i32) {
    %c0_i32 = arith.constant 0 : i32
    %c0_i32_0 = arith.constant 0 : i32
    %c0_i32_1 = arith.constant 0 : i32
    return %c0_i32, %c0_i32_0 : i32, i32
  }
  func.func @transform_4(%arg0: i32) -> (i32, i32) {
    %c0_i32 = arith.constant 0 : i32
    %c0_i32_0 = arith.constant 0 : i32
    %c0_i32_1 = arith.constant 0 : i32
    return %c0_i32, %c0_i32_0 : i32, i32
  }
  func.func @transform_5(%arg0: i32) -> (i32, i32) {
    %c0_i32 = arith.constant 0 : i32
    %c0_i32_0 = arith.constant 0 : i32
    return %arg0, %c0_i32 : i32, i32
  }
  func.func @transform_6(%arg0: i32) -> (i32, i32) {
    %c0_i32 = arith.constant 0 : i32
    %c0_i32_0 = arith.constant 0 : i32
    return %arg0, %c0_i32 : i32, i32
  }
}

</mosaic_0001>

<llo_original>
// kernel: _forward.6
$region0: #{_forward.6}
  #allocation0 [shape = 'u32[]', space=smem, size = 0x4, offset = 0x4, fixed_abs, tag = 'smem constant byte address 0x4 - core index']
  #allocation1 [shape = 'u32[72,128]{1,0:T(1,128)}', space=vmem, size = 0x9000, scoped, tag = 'internal scratch']
  %s0 = inlined_call_operand.vmem [shape: bf16[8,6], index: 0, kind: input, shape index: {}]
  %s1 = inlined_call_operand.vmem [shape: bf16[6,32], index: 1, kind: input, shape index: {}]
  %s2 = inlined_call_operand.vmem [shape: f32[1,32], index: 2, kind: input, shape index: {}]
  %s3 = inlined_call_operand.vmem [shape: f32[8,32], index: 3, kind: output, shape index: {0}]
  %s4 = inlined_call_operand.vmem [shape: f32[1,2,32], index: 4, kind: output, shape index: {1}]
  %5 = xla_tuple %s3, %s4
  %s6 = sld [smem:[#allocation0]]
  $region38: #{_forward.6} parent=0
    _
  %s8 = ssub.s32 1, %s6
  %s9 = scalar_select 0, %s8, %s6
  // Predicated region
  $region2: #{_forward.6} parent=0 // pred_check
    _
  $region3: #{_forward.6} parent=0 // pred_check_branch
    %11 = sbr.rel (0) target = $region5
  $region4: #{_forward.6} parent=0 // pred_region
    _
  $region5: #{_forward.6} parent=0 // pred_fallthru
    _
  // Predicated region
  $region6: #{_forward.6} parent=0 // pred_check
    _
  $region7: #{_forward.6} parent=0 // pred_check_branch
    %13 = sbr.rel (0) target = $region9
  $region8: #{_forward.6} parent=0 // pred_region
    _
  $region9: #{_forward.6} parent=0 // pred_fallthru
    _
  // Predicated region
  $region10: #{_forward.6} parent=0 // pred_check
    _
  $region11: #{_forward.6} parent=0 // pred_check_branch
    %15 = sbr.rel (0) target = $region13
  $region12: #{_forward.6} parent=0 // pred_region
    _
  $region13: #{_forward.6} parent=0 // pred_fallthru
    _
  %v17 = vld [vmem:[%s0] sm:$0xf]
  %v18 = vld [vmem:[%s1] sm:$0x7]
  %v19 = vld [vmem:[%s2] sm:$0x1]
  %v21 = vperm.slane %v19, 0
  %vm23 = vcmask 48128
  %v25 = vsel %vm23, %v17, 0
  %vm27 = vcmask 1042432
  %v29 = vsel %vm27, %v18, 0
  %31 = vmatpush.bf16.msra.mxu0 0
  %32 = vmatpush.bf16.msra.mxu0 0
  %33 = vmatpush.bf16.msra.mxu0 0
  %34 = vmatpush.bf16.msra.mxu0 0
  %35 = vmatpush.bf16.msra.mxu0 0
  %36 = vmatpush.bf16.msra.mxu0 0
  %37 = vmatpush.bf16.msra.mxu0 0
  %38 = vmatpush.bf16.msra.mxu0 %v29
  %39 = vmatmul.bf16.gmra.mxu0 %v25
  %v40 = vpop.f32.mrf.mxu0
  %v41 = vadd.f32 %v21, %v40
  %v42 = vpop.f32.mrf.mxu0
  %43 = vdwg.mxu0
  %vm44 = vcmask 261120
  %45 = vst.msk [vmem:[%s3] sm:$0xff] %vm44, %v41
  %p46 = scmp.ne.s32.totalorder 0, 0
  // Predicated region
  $region14: #{_forward.6} parent=0 // pred_check
    %p47 = pneg %p46
  $region15: #{_forward.6} parent=0 // pred_check_branch
    %49 = sbr.rel (%p47) target = $region17
  $region16: #{_forward.6} parent=0 // pred_region
    %v50 = vsel %vm44, %v41, 0.0
    %v51 = vrot.slane %v50, 4
    %v52 = vadd.f32 %v50, %v51
    %v53 = vrot.slane %v52, 2
    %v54 = vadd.f32 %v52, %v53
    %v55 = vrot.slane %v54, 1
    %v56 = vadd.f32 %v54, %v55
    %vm57 = vcmask 253952
    %58 = vst.msk [vmem:[%s4] sm:$0x1] %vm57, %v56
    %v59 = vmul.f32 %v41, %v41
    %v60 = vsel %vm44, %v59, 0.0
    %v61 = vrot.slane %v60, 4
    %v62 = vadd.f32 %v60, %v61
    %v63 = vrot.slane %v62, 2
    %v64 = vadd.f32 %v62, %v63
    %v65 = vrot.slane %v64, 1
    %v66 = vadd.f32 %v64, %v65
    %67 = vst.msk [vmem:[%s4 + $0x1] sm:$0x1] %vm57, %v66
  $region17: #{_forward.6} parent=0 // pred_fallthru
    _
  %p68 = scmp.eq.s32.totalorder 0, 0
  // Predicated region
  $region18: #{_forward.6} parent=0 // pred_check
    %p69 = pneg %p68
  $region19: #{_forward.6} parent=0 // pred_check_branch
    %71 = sbr.rel (%p69) target = $region21
  $region20: #{_forward.6} parent=0 // pred_region
    %v72 = vlaneseq
    %v73 = vshrl.u32 %v72, 7
    %vm74 = vcmp.lt.s32.totalorder %v73, 8
    %v75 = vsel %vm74, %v41, 0.0
    %v76 = vsel %vm44, %v75, 0.0
    %v77 = vrot.slane %v76, 4
    %v78 = vadd.f32 %v76, %v77
    %v79 = vrot.slane %v78, 2
    %v80 = vadd.f32 %v78, %v79
    %v81 = vrot.slane %v80, 1
    %v82 = vadd.f32 %v80, %v81
    %vm83 = vcmask 253952
    %84 = vst.msk [vmem:[%s4] sm:$0x1] %vm83, %v82
    %v85 = vmul.f32 %v75, %v75
    %v86 = vsel %vm44, %v85, 0.0
    %v87 = vrot.slane %v86, 4
    %v88 = vadd.f32 %v86, %v87
    %v89 = vrot.slane %v88, 2
    %v90 = vadd.f32 %v88, %v89
    %v91 = vrot.slane %v90, 1
    %v92 = vadd.f32 %v90, %v91
    %93 = vst.msk [vmem:[%s4 + $0x1] sm:$0x1] %vm83, %v92
  $region21: #{_forward.6} parent=0 // pred_fallthru
    _
  // Predicated region
  $region22: #{_forward.6} parent=0 // pred_check
    _
  $region23: #{_forward.6} parent=0 // pred_check_branch
    %95 = sbr.rel (0) target = $region25
  $region24: #{_forward.6} parent=0 // pred_region
    _
  $region25: #{_forward.6} parent=0 // pred_fallthru
    _
  // Predicated region
  $region26: #{_forward.6} parent=0 // pred_check
    _
  $region27: #{_forward.6} parent=0 // pred_check_branch
    %97 = sbr.rel (0) target = $region29
  $region28: #{_forward.6} parent=0 // pred_region
    _
  $region29: #{_forward.6} parent=0 // pred_fallthru
    _
  // Predicated region
  $region30: #{_forward.6} parent=0 // pred_check
    _
  $region31: #{_forward.6} parent=0 // pred_check_branch
    %99 = sbr.rel (0) target = $region33
  $region32: #{_forward.6} parent=0 // pred_region
    _
  $region33: #{_forward.6} parent=0 // pred_fallthru
    _
  // Predicated region
  $region34: #{_forward.6} parent=0 // pred_check
    _
  $region35: #{_forward.6} parent=0 // pred_check_branch
    %101 = sbr.rel (0) target = $region37
  $region36: #{_forward.6} parent=0 // pred_region
    _
  $region37: #{_forward.6} parent=0 // pred_fallthru
    _

// kernel: _forward.8
$region0: #{_forward.8}
  #allocation0 [shape = 'u32[]', space=smem, size = 0x4, offset = 0x4, fixed_abs, tag = 'smem constant byte address 0x4 - core index']
  #allocation1 [shape = 'u32[72,128]{1,0:T(1,128)}', space=vmem, size = 0x9000, scoped, tag = 'internal scratch']
  %s0 = inlined_call_operand.vmem [shape: f32[8,32], index: 0, kind: input, shape index: {}]
  %s1 = inlined_call_operand.vmem [shape: f32[1,32], index: 1, kind: input, shape index: {}]
  %s2 = inlined_call_operand.vmem [shape: f32[1,32], index: 2, kind: input, shape index: {}]
  %s3 = inlined_call_operand.vmem [shape: bf16[32,96], index: 3, kind: input, shape index: {}]
  %s4 = inlined_call_operand.vmem [shape: bf16[32,4], index: 4, kind: input, shape index: {}]
  %s5 = inlined_call_operand.vmem [shape: bf16[8,96], index: 5, kind: output, shape index: {0}]
  %s6 = inlined_call_operand.vmem [shape: f32[8,4], index: 6, kind: output, shape index: {1}]
  %7 = xla_tuple %s5, %s6
  %s8 = sld [smem:[#allocation0]]
  $region38: #{_forward.8} parent=0
    _
  %s10 = ssub.s32 1, %s8
  %s11 = scalar_select 0, %s10, %s8
  // Predicated region
  $region2: #{_forward.8} parent=0 // pred_check
    _
  $region3: #{_forward.8} parent=0 // pred_check_branch
    %13 = sbr.rel (0) target = $region5
  $region4: #{_forward.8} parent=0 // pred_region
    _
  $region5: #{_forward.8} parent=0 // pred_fallthru
    _
  // Predicated region
  $region6: #{_forward.8} parent=0 // pred_check
    _
  $region7: #{_forward.8} parent=0 // pred_check_branch
    %15 = sbr.rel (0) target = $region9
  $region8: #{_forward.8} parent=0 // pred_region
    _
  $region9: #{_forward.8} parent=0 // pred_fallthru
    _
  // Predicated region
  $region10: #{_forward.8} parent=0 // pred_check
    _
  $region11: #{_forward.8} parent=0 // pred_check_branch
    %17 = sbr.rel (0) target = $region13
  $region12: #{_forward.8} parent=0 // pred_region
    _
  $region13: #{_forward.8} parent=0 // pred_fallthru
    _
  // Predicated region
  $region14: #{_forward.8} parent=0 // pred_check
    _
  $region15: #{_forward.8} parent=0 // pred_check_branch
    %19 = sbr.rel (0) target = $region17
  $region16: #{_forward.8} parent=0 // pred_region
    _
  $region17: #{_forward.8} parent=0 // pred_fallthru
    _
  // Predicated region
  $region18: #{_forward.8} parent=0 // pred_check
    _
  $region19: #{_forward.8} parent=0 // pred_check_branch
    %21 = sbr.rel (0) target = $region21
  $region20: #{_forward.8} parent=0 // pred_region
    _
  $region21: #{_forward.8} parent=0 // pred_fallthru
    _
  %v23 = vld [vmem:[%s0] sm:$0xff]
  %v24 = vld [vmem:[%s1] sm:$0x1]
  %v26 = vperm.slane %v24, 0
  %v28 = vmul.f32 %v23, %v26
  %v29 = vld [vmem:[%s2] sm:$0x1]
  %v31 = vperm.slane %v29, 0
  %v33 = vadd.f32 %v28, %v31
  %v34 = vmax.f32 %v33, 0.0
  %v35 = vpack.c.bf16 %v34, %v34
  %v36 = vld [vmem:[%s3] sm:$0xf]
  %v37 = vld [vmem:[%s3 + $0x4] sm:$0xf]
  %v38 = vld [vmem:[%s3 + $0x8] sm:$0xf]
  %v39 = vld [vmem:[%s3 + $0xc] sm:$0xf]
  %v44 = vunpack.c.l.b16 %v36
  %v45 = vunpack.c.l.b16 %v37
  %v46 = vunpack.c.l.b16 %v38
  %v47 = vunpack.c.l.b16 %v39
  %v48 = vpack.c.b16 %v45, %v44
  %v49 = vpack.c.b16 %v47, %v46
  %vm52 = vcmask 261120
  %v54 = vsel %vm52, %v35, 0
  %56 = vmatpush.bf16.msra.mxu0 0
  %57 = vmatpush.bf16.msra.mxu0 0
  %58 = vmatpush.bf16.msra.mxu0 0
  %59 = vmatpush.bf16.msra.mxu0 0
  %60 = vmatpush.bf16.msra.mxu0 0
  %61 = vmatpush.bf16.msra.mxu0 0
  %62 = vmatpush.bf16.msra.mxu0 %v49
  %63 = vmatpush.bf16.msra.mxu0 %v48
  %64 = vmatmul.bf16.gmra.mxu0 %v54
  %v65 = vpop.f32.mrf.mxu0
  %v66 = vadd.f32 0.0, %v65
  %v67 = vpop.f32.mrf.mxu0
  %68 = vdwg.mxu0
  %v69 = vpack.c.bf16 %v66, %v66
  %vm70 = vcmask 781312
  %71 = vst.msk [vmem:[%s5] sm:$0xf] %vm70, %v69
  %v72 = vld [vmem:[%s4] sm:$0xf]
  %v73 = vld [vmem:[%s4 + $0x4] sm:$0xf]
  %v74 = vld [vmem:[%s4 + $0x8] sm:$0xf]
  %v75 = vld [vmem:[%s4 + $0xc] sm:$0xf]
  %v80 = vunpack.c.l.b16 %v72
  %v81 = vunpack.c.l.b16 %v73
  %v82 = vunpack.c.l.b16 %v74
  %v83 = vunpack.c.l.b16 %v75
  %v84 = vpack.c.b16 %v81, %v80
  %v85 = vpack.c.b16 %v83, %v82
  %88 = vmatpush.bf16.msra.mxu0 0
  %89 = vmatpush.bf16.msra.mxu0 0
  %90 = vmatpush.bf16.msra.mxu0 0
  %91 = vmatpush.bf16.msra.mxu0 0
  %92 = vmatpush.bf16.msra.mxu0 0
  %93 = vmatpush.bf16.msra.mxu0 0
  %94 = vmatpush.bf16.msra.mxu0 %v85
  %95 = vmatpush.bf16.msra.mxu0 %v84
  %96 = vmatmul.bf16.gmra.mxu0 %v54
  %v97 = vpop.f32.mrf.mxu0
  %v98 = vadd.f32 0.0, %v97
  %v99 = vpop.f32.mrf.mxu0
  %100 = vdwg.mxu0
  %vm101 = vcmask 31744
  %102 = vst.msk [vmem:[%s6] sm:$0xff] %vm101, %v98
  // Predicated region
  $region22: #{_forward.8} parent=0 // pred_check
    _
  $region23: #{_forward.8} parent=0 // pred_check_branch
    %104 = sbr.rel (0) target = $region25
  $region24: #{_forward.8} parent=0 // pred_region
    _
  $region25: #{_forward.8} parent=0 // pred_fallthru
    _
  // Predicated region
  $region26: #{_forward.8} parent=0 // pred_check
    _
  $region27: #{_forward.8} parent=0 // pred_check_branch
    %106 = sbr.rel (0) target = $region29
  $region28: #{_forward.8} parent=0 // pred_region
    _
  $region29: #{_forward.8} parent=0 // pred_fallthru
    _
  // Predicated region
  $region30: #{_forward.8} parent=0 // pred_check
    _
  $region31: #{_forward.8} parent=0 // pred_check_branch
    %108 = sbr.rel (0) target = $region33
  $region32: #{_forward.8} parent=0 // pred_region
    _
  $region33: #{_forward.8} parent=0 // pred_fallthru
    _
  // Predicated region
  $region34: #{_forward.8} parent=0 // pred_check
    _
  $region35: #{_forward.8} parent=0 // pred_check_branch
    %110 = sbr.rel (0) target = $region37
  $region36: #{_forward.8} parent=0 // pred_region
    _
  $region37: #{_forward.8} parent=0 // pred_fallthru
    _

// kernel: _forward.9
$region0: #{_forward.9}
  #allocation0 [shape = 'u32[]', space=smem, size = 0x4, offset = 0x4, fixed_abs, tag = 'smem constant byte address 0x4 - core index']
  #allocation1 [shape = 'u32[72,128]{1,0:T(1,128)}', space=vmem, size = 0x9000, scoped, tag = 'internal scratch']
  %s0 = inlined_call_operand.vmem [shape: f32[12,32], index: 0, kind: input, shape index: {}]
  %s1 = inlined_call_operand.vmem [shape: f32[1,32], index: 1, kind: input, shape index: {}]
  %s2 = inlined_call_operand.vmem [shape: f32[1,32], index: 2, kind: input, shape index: {}]
  %s3 = inlined_call_operand.vmem [shape: bf16[32,96], index: 3, kind: input, shape index: {}]
  %s4 = inlined_call_operand.vmem [shape: bf16[32,4], index: 4, kind: input, shape index: {}]
  %s5 = inlined_call_operand.vmem [shape: bf16[12,96], index: 5, kind: output, shape index: {0}]
  %s6 = inlined_call_operand.vmem [shape: f32[12,4], index: 6, kind: output, shape index: {1}]
  %7 = xla_tuple %s5, %s6
  %s8 = sld [smem:[#allocation0]]
  $region38: #{_forward.9} parent=0
    _
  %s10 = ssub.s32 1, %s8
  %s11 = scalar_select 0, %s10, %s8
  // Predicated region
  $region2: #{_forward.9} parent=0 // pred_check
    _
  $region3: #{_forward.9} parent=0 // pred_check_branch
    %13 = sbr.rel (0) target = $region5
  $region4: #{_forward.9} parent=0 // pred_region
    _
  $region5: #{_forward.9} parent=0 // pred_fallthru
    _
  // Predicated region
  $region6: #{_forward.9} parent=0 // pred_check
    _
  $region7: #{_forward.9} parent=0 // pred_check_branch
    %15 = sbr.rel (0) target = $region9
  $region8: #{_forward.9} parent=0 // pred_region
    _
  $region9: #{_forward.9} parent=0 // pred_fallthru
    _
  // Predicated region
  $region10: #{_forward.9} parent=0 // pred_check
    _
  $region11: #{_forward.9} parent=0 // pred_check_branch
    %17 = sbr.rel (0) target = $region13
  $region12: #{_forward.9} parent=0 // pred_region
    _
  $region13: #{_forward.9} parent=0 // pred_fallthru
    _
  // Predicated region
  $region14: #{_forward.9} parent=0 // pred_check
    _
  $region15: #{_forward.9} parent=0 // pred_check_branch
    %19 = sbr.rel (0) target = $region17
  $region16: #{_forward.9} parent=0 // pred_region
    _
  $region17: #{_forward.9} parent=0 // pred_fallthru
    _
  // Predicated region
  $region18: #{_forward.9} parent=0 // pred_check
    _
  $region19: #{_forward.9} parent=0 // pred_check_branch
    %21 = sbr.rel (0) target = $region21
  $region20: #{_forward.9} parent=0 // pred_region
    _
  $region21: #{_forward.9} parent=0 // pred_fallthru
    _
  %v23 = vld [vmem:[%s0] sm:$0xff]
  %v24 = vld [vmem:[%s0 + $0x8] sm:$0xf]
  %v25 = vld [vmem:[%s1] sm:$0x1]
  %v27 = vperm.slane %v25, 0
  %v29 = vmul.f32 %v23, %v27
  %v30 = vmul.f32 %v24, %v27
  %v31 = vld [vmem:[%s2] sm:$0x1]
  %v33 = vperm.slane %v31, 0
  %v35 = vadd.f32 %v29, %v33
  %v36 = vadd.f32 %v30, %v33
  %v37 = vmax.f32 %v35, 0.0
  %v38 = vmax.f32 %v36, 0.0
  %v39 = vpack.c.bf16 %v38, %v37
  %v40 = vld [vmem:[%s3] sm:$0xf]
  %v41 = vld [vmem:[%s3 + $0x4] sm:$0xf]
  %v42 = vld [vmem:[%s3 + $0x8] sm:$0xf]
  %v43 = vld [vmem:[%s3 + $0xc] sm:$0xf]
  %v48 = vunpack.c.l.b16 %v40
  %v49 = vunpack.c.l.b16 %v41
  %v50 = vunpack.c.l.b16 %v42
  %v51 = vunpack.c.l.b16 %v43
  %v52 = vpack.c.b16 %v49, %v48
  %v53 = vpack.c.b16 %v51, %v50
  %vm56 = vcmask 261120
  %v58 = vsel %vm56, %v39, 0
  %60 = vmatpush.bf16.msra.mxu0 0
  %61 = vmatpush.bf16.msra.mxu0 0
  %62 = vmatpush.bf16.msra.mxu0 0
  %63 = vmatpush.bf16.msra.mxu0 0
  %64 = vmatpush.bf16.msra.mxu0 0
  %65 = vmatpush.bf16.msra.mxu0 0
  %66 = vmatpush.bf16.msra.mxu0 %v53
  %67 = vmatpush.bf16.msra.mxu0 %v52
  %68 = vmatmul.bf16.gmra.mxu0 %v58
  %v69 = vpop.f32.mrf.mxu0
  %v70 = vadd.f32 0.0, %v69
  %v71 = vpop.f32.mrf.mxu0
  %v72 = vadd.f32 0.0, %v71
  %73 = vdwg.mxu0
  %v74 = vpack.c.bf16 %v70, %v70
  %v75 = vpack.c.bf16 %v72, %v72
  %vm76 = vcmask 781312
  %77 = vst.msk [vmem:[%s5] sm:$0xf] %vm76, %v74
  %vm78 = vcmask 779264
  %79 = vst.msk [vmem:[%s5 + $0x4] sm:$0x3] %vm78, %v75
  %v80 = vld [vmem:[%s4] sm:$0xf]
  %v81 = vld [vmem:[%s4 + $0x4] sm:$0xf]
  %v82 = vld [vmem:[%s4 + $0x8] sm:$0xf]
  %v83 = vld [vmem:[%s4 + $0xc] sm:$0xf]
  %v88 = vunpack.c.l.b16 %v80
  %v89 = vunpack.c.l.b16 %v81
  %v90 = vunpack.c.l.b16 %v82
  %v91 = vunpack.c.l.b16 %v83
  %v92 = vpack.c.b16 %v89, %v88
  %v93 = vpack.c.b16 %v91, %v90
  %96 = vmatpush.bf16.msra.mxu0 0
  %97 = vmatpush.bf16.msra.mxu0 0
  %98 = vmatpush.bf16.msra.mxu0 0
  %99 = vmatpush.bf16.msra.mxu0 0
  %100 = vmatpush.bf16.msra.mxu0 0
  %101 = vmatpush.bf16.msra.mxu0 0
  %102 = vmatpush.bf16.msra.mxu0 %v93
  %103 = vmatpush.bf16.msra.mxu0 %v92
  %104 = vmatmul.bf16.gmra.mxu0 %v58
  %v105 = vpop.f32.mrf.mxu0
  %v106 = vadd.f32 0.0, %v105
  %v107 = vpop.f32.mrf.mxu0
  %v108 = vadd.f32 0.0, %v107
  %109 = vdwg.mxu0
  %vm110 = vcmask 31744
  %111 = vst.msk [vmem:[%s6] sm:$0xff] %vm110, %v106
  %vm112 = vcmask 27648
  %113 = vst.msk [vmem:[%s6 + $0x8] sm:$0xf] %vm112, %v108
  // Predicated region
  $region22: #{_forward.9} parent=0 // pred_check
    _
  $region23: #{_forward.9} parent=0 // pred_check_branch
    %115 = sbr.rel (0) target = $region25
  $region24: #{_forward.9} parent=0 // pred_region
    _
  $region25: #{_forward.9} parent=0 // pred_fallthru
    _
  // Predicated region
  $region26: #{_forward.9} parent=0 // pred_check
    _
  $region27: #{_forward.9} parent=0 // pred_check_branch
    %117 = sbr.rel (0) target = $region29
  $region28: #{_forward.9} parent=0 // pred_region
    _
  $region29: #{_forward.9} parent=0 // pred_fallthru
    _
  // Predicated region
  $region30: #{_forward.9} parent=0 // pred_check
    _
  $region31: #{_forward.9} parent=0 // pred_check_branch
    %119 = sbr.rel (0) target = $region33
  $region32: #{_forward.9} parent=0 // pred_region
    _
  $region33: #{_forward.9} parent=0 // pred_fallthru
    _
  // Predicated region
  $region34: #{_forward.9} parent=0 // pred_check
    _
  $region35: #{_forward.9} parent=0 // pred_check_branch
    %121 = sbr.rel (0) target = $region37
  $region36: #{_forward.9} parent=0 // pred_region
    _
  $region37: #{_forward.9} parent=0 // pred_fallthru
    _

// kernel: _forward.7
$region0: #{_forward.7}
  #allocation0 [shape = 'u32[]', space=smem, size = 0x4, offset = 0x4, fixed_abs, tag = 'smem constant byte address 0x4 - core index']
  #allocation1 [shape = 'u32[72,128]{1,0:T(1,128)}', space=vmem, size = 0x9000, scoped, tag = 'internal scratch']
  %s0 = inlined_call_operand.vmem [shape: bf16[12,19], index: 0, kind: input, shape index: {}]
  %s1 = inlined_call_operand.vmem [shape: bf16[19,32], index: 1, kind: input, shape index: {}]
  %s2 = inlined_call_operand.vmem [shape: f32[1,32], index: 2, kind: input, shape index: {}]
  %s3 = inlined_call_operand.vmem [shape: f32[12,32], index: 3, kind: output, shape index: {0}]
  %s4 = inlined_call_operand.vmem [shape: f32[1,2,32], index: 4, kind: output, shape index: {1}]
  %5 = xla_tuple %s3, %s4
  %s6 = sld [smem:[#allocation0]]
  $region38: #{_forward.7} parent=0
    _
  %s8 = ssub.s32 1, %s6
  %s9 = scalar_select 0, %s8, %s6
  // Predicated region
  $region2: #{_forward.7} parent=0 // pred_check
    _
  $region3: #{_forward.7} parent=0 // pred_check_branch
    %11 = sbr.rel (0) target = $region5
  $region4: #{_forward.7} parent=0 // pred_region
    _
  $region5: #{_forward.7} parent=0 // pred_fallthru
    _
  // Predicated region
  $region6: #{_forward.7} parent=0 // pred_check
    _
  $region7: #{_forward.7} parent=0 // pred_check_branch
    %13 = sbr.rel (0) target = $region9
  $region8: #{_forward.7} parent=0 // pred_region
    _
  $region9: #{_forward.7} parent=0 // pred_fallthru
    _
  // Predicated region
  $region10: #{_forward.7} parent=0 // pred_check
    _
  $region11: #{_forward.7} parent=0 // pred_check_branch
    %15 = sbr.rel (0) target = $region13
  $region12: #{_forward.7} parent=0 // pred_region
    _
  $region13: #{_forward.7} parent=0 // pred_fallthru
    _
  %v17 = vld [vmem:[%s0] sm:$0xf]
  %v18 = vld [vmem:[%s0 + $0x4] sm:$0x3]
  %v19 = vld [vmem:[%s1] sm:$0xf]
  %v20 = vld [vmem:[%s1 + $0x4] sm:$0xf]
  %v21 = vld [vmem:[%s1 + $0x8] sm:$0x3]
  %v22 = vld [vmem:[%s2] sm:$0x1]
  %v24 = vperm.slane %v22, 0
  %v28 = vunpack.c.l.b16 %v17
  %v29 = vunpack.c.l.b16 %v18
  %v30 = vpack.c.b16 %v29, %v28
  %v34 = vunpack.c.l.b16 %v19
  %v35 = vunpack.c.l.b16 %v20
  %v36 = vunpack.c.l.b16 %v21
  %v37 = vpack.c.b16 %v35, %v34
  %v38 = vpack.c.b16 %v36, %v36
  %vm40 = vcmask 154624
  %v42 = vsel %vm40, %v30, 0
  %vm44 = vcmask 1040384
  %vm45 = vcmask 1041408
  %v46 = vsel %vm44, 4294967295, 65535
  %v47 = vsel %vm45, %v46, 0
  %v49 = vand.u32 %v38, %v47
  %51 = vmatpush.bf16.msra.mxu0 0
  %52 = vmatpush.bf16.msra.mxu0 0
  %53 = vmatpush.bf16.msra.mxu0 0
  %54 = vmatpush.bf16.msra.mxu0 0
  %55 = vmatpush.bf16.msra.mxu0 0
  %56 = vmatpush.bf16.msra.mxu0 0
  %57 = vmatpush.bf16.msra.mxu0 %v49
  %58 = vmatpush.bf16.msra.mxu0 %v37
  %59 = vmatmul.bf16.gmra.mxu0 %v42
  %v60 = vpop.f32.mrf.mxu0
  %v61 = vadd.f32 %v24, %v60
  %v62 = vpop.f32.mrf.mxu0
  %v63 = vadd.f32 %v24, %v62
  %64 = vdwg.mxu0
  %vm65 = vcmask 261120
  %66 = vst.msk [vmem:[%s3] sm:$0xff] %vm65, %v61
  %vm67 = vcmask 257024
  %68 = vst.msk [vmem:[%s3 + $0x8] sm:$0xf] %vm67, %v63
  %p69 = scmp.ne.s32.totalorder 0, 0
  // Predicated region
  $region14: #{_forward.7} parent=0 // pred_check
    %p70 = pneg %p69
  $region15: #{_forward.7} parent=0 // pred_check_branch
    %72 = sbr.rel (%p70) target = $region17
  $region16: #{_forward.7} parent=0 // pred_region
    %v73 = vsel %vm65, %v61, 0.0
    %v74 = vsel %vm67, %v63, 0.0
    %v75 = vadd.f32 %v73, %v74
    %v76 = vrot.slane %v75, 4
    %v77 = vadd.f32 %v75, %v76
    %v78 = vrot.slane %v77, 2
    %v79 = vadd.f32 %v77, %v78
    %v80 = vrot.slane %v79, 1
    %v81 = vadd.f32 %v79, %v80
    %vm82 = vcmask 253952
    %83 = vst.msk [vmem:[%s4] sm:$0x1] %vm82, %v81
    %v84 = vmul.f32 %v61, %v61
    %v85 = vmul.f32 %v63, %v63
    %v86 = vsel %vm65, %v84, 0.0
    %v87 = vsel %vm67, %v85, 0.0
    %v88 = vadd.f32 %v86, %v87
    %v89 = vrot.slane %v88, 4
    %v90 = vadd.f32 %v88, %v89
    %v91 = vrot.slane %v90, 2
    %v92 = vadd.f32 %v90, %v91
    %v93 = vrot.slane %v92, 1
    %v94 = vadd.f32 %v92, %v93
    %95 = vst.msk [vmem:[%s4 + $0x1] sm:$0x1] %vm82, %v94
  $region17: #{_forward.7} parent=0 // pred_fallthru
    _
  %p96 = scmp.eq.s32.totalorder 0, 0
  // Predicated region
  $region18: #{_forward.7} parent=0 // pred_check
    %p97 = pneg %p96
  $region19: #{_forward.7} parent=0 // pred_check_branch
    %99 = sbr.rel (%p97) target = $region21
  $region20: #{_forward.7} parent=0 // pred_region
    %v100 = vlaneseq
    %v101 = vshrl.u32 %v100, 7
    %v102 = vadd.s32 %v101, 8
    %vm103 = vcmp.lt.s32.totalorder %v101, 12
    %vm104 = vcmp.lt.s32.totalorder %v102, 12
    %v105 = vsel %vm103, %v61, 0.0
    %v106 = vsel %vm104, %v63, 0.0
    %v107 = vsel %vm65, %v105, 0.0
    %v108 = vsel %vm67, %v106, 0.0
    %v109 = vadd.f32 %v107, %v108
    %v110 = vrot.slane %v109, 4
    %v111 = vadd.f32 %v109, %v110
    %v112 = vrot.slane %v111, 2
    %v113 = vadd.f32 %v111, %v112
    %v114 = vrot.slane %v113, 1
    %v115 = vadd.f32 %v113, %v114
    %vm116 = vcmask 253952
    %117 = vst.msk [vmem:[%s4] sm:$0x1] %vm116, %v115
    %v118 = vmul.f32 %v105, %v105
    %v119 = vmul.f32 %v106, %v106
    %v120 = vsel %vm65, %v118, 0.0
    %v121 = vsel %vm67, %v119, 0.0
    %v122 = vadd.f32 %v120, %v121
    %v123 = vrot.slane %v122, 4
    %v124 = vadd.f32 %v122, %v123
    %v125 = vrot.slane %v124, 2
    %v126 = vadd.f32 %v124, %v125
    %v127 = vrot.slane %v126, 1
    %v128 = vadd.f32 %v126, %v127
    %129 = vst.msk [vmem:[%s4 + $0x1] sm:$0x1] %vm116, %v128
  $region21: #{_forward.7} parent=0 // pred_fallthru
    _
  // Predicated region
  $region22: #{_forward.7} parent=0 // pred_check
    _
  $region23: #{_forward.7} parent=0 // pred_check_branch
    %131 = sbr.rel (0) target = $region25
  $region24: #{_forward.7} parent=0 // pred_region
    _
  $region25: #{_forward.7} parent=0 // pred_fallthru
    _
  // Predicated region
  $region26: #{_forward.7} parent=0 // pred_check
    _
  $region27: #{_forward.7} parent=0 // pred_check_branch
    %133 = sbr.rel (0) target = $region29
  $region28: #{_forward.7} parent=0 // pred_region
    _
  $region29: #{_forward.7} parent=0 // pred_fallthru
    _
  // Predicated region
  $region30: #{_forward.7} parent=0 // pred_check
    _
  $region31: #{_forward.7} parent=0 // pred_check_branch
    %135 = sbr.rel (0) target = $region33
  $region32: #{_forward.7} parent=0 // pred_region
    _
  $region33: #{_forward.7} parent=0 // pred_fallthru
    _
  // Predicated region
  $region34: #{_forward.7} parent=0 // pred_check
    _
  $region35: #{_forward.7} parent=0 // pred_check_branch
    %137 = sbr.rel (0) target = $region37
  $region36: #{_forward.7} parent=0 // pred_region
    _
  $region37: #{_forward.7} parent=0 // pred_fallthru
    _

</llo_original>
